<compile_context>
chip_gen: v7x
topology: tpu7x:2x2x1
jax: 0.10.0
libtpu: 0.0.40
codegen_flags: <defaults>
</compile_context>

<pallas_src>
import functools

import jax
import jax.numpy as jnp
from jax.experimental import pallas as pl
from jax.experimental.pallas import tpu as pltpu


# ----------------------------------------------------------------------------
# Pallas kernels (2-D grid = (M tiles, OC tiles); full K per step)
# ----------------------------------------------------------------------------
def _conv_stats_kernel(p_ref, w_ref, y_ref, stats_ref):
    """BN pass 1: full-K conv matmul + per-(M-tile, channel) sum / sum-of-sq.

    stats_ref rows: 0 = sum, 1 = sum of squares (rows 2..7 zero padding so the
    stats block stays (8, 128)-aligned).  Stats are taken from the f32 matmul
    result *before* the (possibly bf16) cast of the stored intermediate.
    """
    y = jnp.dot(p_ref[...], w_ref[...], preferred_element_type=jnp.float32)
    stats_ref[0:1, :] = jnp.sum(y, axis=0, keepdims=True)
    stats_ref[1:2, :] = jnp.sum(y * y, axis=0, keepdims=True)
    stats_ref[2:8, :] = jnp.zeros((6, y.shape[1]), jnp.float32)
    y_ref[...] = y.astype(y_ref.dtype)


def _bn_act_kernel(y_ref, scale_ref, shift_ref, o_ref, *, act):
    """BN pass 2: single-FMA batchnorm + activation, tiled elementwise."""
    y = y_ref[...].astype(jnp.float32)
    o_ref[...] = act(y * scale_ref[...] + shift_ref[...]).astype(o_ref.dtype)


def _conv_bias_act_kernel(p_ref, w_ref, b_ref, o_ref, *, act):
    """No-BN path: full-K conv matmul + bias + activation in one pass."""
    y = jnp.dot(p_ref[...], w_ref[...], preferred_element_type=jnp.float32)
    o_ref[...] = act(y + b_ref[...]).astype(o_ref.dtype)


# ----------------------------------------------------------------------------
# Glue: im2col + wrapper
# ----------------------------------------------------------------------------
def _round_up(x, m):
    return (x + m - 1) // m * m


def _cdiv(a, b):
    return -(-a // b)


def _im2col(x, kh, kw, stride, padding):
    """x: (N, C, H, W) -> patches (N*OH*OW, C*KH*KW), plus OH, OW."""
    n, c, h, w = x.shape
    xp = jnp.pad(x, ((0, 0), (0, 0), (padding, padding), (padding, padding)))
    oh = (h + 2 * padding - kh) // stride + 1
    ow = (w + 2 * padding - kw) // stride + 1
    cols = []
    for i in range(kh):
        for j in range(kw):
            cols.append(xp[:, :, i:i + stride * oh:stride, j:j + stride * ow:stride])
    patches = jnp.stack(cols, axis=2)                       # (N, C, KH*KW, OH, OW)
    patches = patches.transpose(0, 3, 4, 1, 2).reshape(n * oh * ow, c * kh * kw)
    return patches, oh, ow


def conv2d_block(x, weight, *, stride, padding, normalize,
                 gamma=None, beta=None, bias=None,
                 activation=lambda v: jnp.maximum(v, 0.0), eps=1e-5,
                 use_bf16_matmul=True):
    """Forward of Conv2dBlock.  x: (N, C_in, H, W) NCHW, weight: (OC, C_in, KH, KW)."""
    n, c_in, _, _ = x.shape
    oc, _, kh, kw = weight.shape

    op_dtype = jnp.bfloat16 if use_bf16_matmul else jnp.float32
    y_dtype = jnp.bfloat16 if use_bf16_matmul else jnp.float32

    # Cast BEFORE im2col so the KH*KW-duplicated patches array in HBM is
    # already narrow (halves the dominant HBM stream in the bf16 default).
    patches, oh, ow = _im2col(x.astype(op_dtype), kh, kw, stride, padding)
    m, kdim = patches.shape

    # ---- lane-dense channel padding & tile sizes ----------------------------
    ocp = _round_up(oc, 128)                # lane-dense output channels
    tn = 128                                # v5e MXU width; lane-dense blocks
    nt = ocp // tn

    k_pad = _round_up(kdim, 128)            # K padded to 128 only; full K/block

    m_pad8 = _round_up(m, 8)
    itemsize = jnp.dtype(op_dtype).itemsize
    # Cap the per-buffer patch block at ~4 MiB so the double-buffered working
    # set stays well under the 32 MiB scoped VMEM limit on all generations.
    max_tm = max(8, (4 * 1024 * 1024 // (k_pad * itemsize)) // 8 * 8)
    tm_target = max(8, min(512, max_tm, m_pad8))
    mt = max(1, _cdiv(m_pad8, tm_target))
    if mt * nt < 2 and m_pad8 >= 16:
        mt = max(mt, 2)                     # >= 2 parallel blocks (v7x megacore)
    tm = _round_up(_cdiv(m_pad8, mt), 8)
    m_pad = mt * tm

    # Zero padding is exactly neutral for the conv and the BN statistics
    # (padded patch rows are all-zero, bias is added only after BN-less conv).
    patches = jnp.pad(patches, ((0, m_pad - m), (0, k_pad - kdim)))
    w_t = weight.reshape(oc, c_in * kh * kw).T.astype(op_dtype)      # (K, OC)
    w_t = jnp.pad(w_t, ((0, k_pad - kdim), (0, ocp - oc)))

    p_spec = pl.BlockSpec((tm, k_pad), lambda i, j: (i, 0))
    w_spec = pl.BlockSpec((k_pad, tn), lambda i, j: (0, j))          # resident
    y_spec = pl.BlockSpec((tm, tn), lambda i, j: (i, j))
    vec_spec = pl.BlockSpec((1, tn), lambda i, j: (0, j))

    cparams = pltpu.CompilerParams(
        dimension_semantics=("parallel", "parallel"),
        vmem_limit_bytes=32 * 1024 * 1024)
    flops = 2 * m_pad * k_pad * ocp
    in_bytes = patches.size * itemsize + w_t.size * itemsize

    if normalize:
        # ---------------- pass 1: conv + per-tile channel stats --------------
        cost1 = pl.CostEstimate(
            flops=flops, transcendentals=0,
            bytes_accessed=in_bytes
            + m_pad * ocp * jnp.dtype(y_dtype).itemsize + 8 * mt * ocp * 4)
        y_conv, stats = pl.pallas_call(
            _conv_stats_kernel,
            out_shape=(jax.ShapeDtypeStruct((m_pad, ocp), y_dtype),
                       jax.ShapeDtypeStruct((8 * mt, ocp), jnp.float32)),
            grid_spec=pltpu.PrefetchScalarGridSpec(
                num_scalar_prefetch=0,
                grid=(mt, nt),
                in_specs=[p_spec, w_spec],
                out_specs=(y_spec,
                           pl.BlockSpec((8, tn), lambda i, j: (i, j)))),
            compiler_params=cparams,
            cost_estimate=cost1,
        )(patches, w_t)

        # ---- tiny global reduction + BN folding (scale, shift) in plain JAX -
        # NOTE: var = E[y^2] - E[y]^2 can cancel when |mean| >> std; sums are
        # f32 and conv outputs are O(1) here, so this is acceptable.
        # TODO(synk): Welford-merge the per-tile stats if large-magnitude
        # activations ever need a tighter variance.
        stats = stats.reshape(mt, 8, ocp)
        ch_sum = stats[:, 0, :].sum(axis=0)
        ch_sumsq = stats[:, 1, :].sum(axis=0)
        mean = ch_sum / m                       # padded rows are exact zeros
        var = jnp.maximum(ch_sumsq / m - mean * mean, 0.0)   # biased variance
        gamma_p = jnp.pad(gamma.astype(jnp.float32), (0, ocp - oc))
        beta_p = jnp.pad(beta.astype(jnp.float32), (0, ocp - oc))
        scale = gamma_p * jax.lax.rsqrt(var + eps)
        shift = beta_p - mean * scale

        # ---------------- pass 2: act(y * scale + shift), tiled ---------------
        out_flat = pl.pallas_call(
            functools.partial(_bn_act_kernel, act=activation),
            out_shape=jax.ShapeDtypeStruct((m_pad, ocp), jnp.float32),
            grid_spec=pltpu.PrefetchScalarGridSpec(
                num_scalar_prefetch=0,
                grid=(mt, nt),
                in_specs=[y_spec, vec_spec, vec_spec],
                out_specs=y_spec),
            compiler_params=cparams,
        )(y_conv, scale.reshape(1, ocp), shift.reshape(1, ocp))
    else:
        bias_p = jnp.pad(bias.astype(jnp.float32), (0, ocp - oc)).reshape(1, ocp)
        cost = pl.CostEstimate(
            flops=flops, transcendentals=0,
            bytes_accessed=in_bytes + m_pad * ocp * 4 + ocp * 4)
        out_flat = pl.pallas_call(
            functools.partial(_conv_bias_act_kernel, act=activation),
            out_shape=jax.ShapeDtypeStruct((m_pad, ocp), jnp.float32),
            grid_spec=pltpu.PrefetchScalarGridSpec(
                num_scalar_prefetch=0,
                grid=(mt, nt),
                in_specs=[p_spec, w_spec, vec_spec],
                out_specs=y_spec),
            compiler_params=cparams,
            cost_estimate=cost,
        )(patches, w_t, bias_p)

    # (M_pad, OCp) -> slice valid -> (N, OH, OW, OC) -> NCHW (module contract).
    return out_flat[:m, :oc].reshape(n, oh, ow, oc).transpose(0, 3, 1, 2)


# ----------------------------------------------------------------------------
# References (plain JAX) for correctness checks
# ----------------------------------------------------------------------------
def _conv_ref(x, weight, stride, padding):
    return jax.lax.conv_general_dilated(
        x, weight, window_strides=(stride, stride),
        padding=((padding, padding), (padding, padding)),
        dimension_numbers=('NCHW', 'OIHW', 'NCHW'),
        precision=jax.lax.Precision.HIGHEST)


def _reference_bn(x, weight, gamma, beta, stride, padding, eps=1e-5):
    y = _conv_ref(x, weight, stride, padding)
    mean = y.mean(axis=(0, 2, 3), keepdims=True)
    var = ((y - mean) ** 2).mean(axis=(0, 2, 3), keepdims=True)
    y = gamma.reshape(1, -1, 1, 1) * (y - mean) / jnp.sqrt(var + eps) \
        + beta.reshape(1, -1, 1, 1)
    return jnp.maximum(y, 0.0)


def _reference_bias(x, weight, bias, stride, padding):
    y = _conv_ref(x, weight, stride, padding) + bias.reshape(1, -1, 1, 1)
    return jnp.maximum(y, 0.0)


if __name__ == "__main__":
    key = jax.random.PRNGKey(0)

    # ---- Test 1: BN path, default bf16 MXU operands (relaxed tolerance) -----
    N, C_IN, H, W = 2, 4, 16, 16
    OC, KH, KW = 8, 3, 3
    STRIDE, PAD = 1, 1

    kx, kw_, kg, kb = jax.random.split(key, 4)
    x = jax.random.normal(kx, (N, C_IN, H, W), dtype=jnp.float32)
    weight = jax.random.normal(kw_, (OC, C_IN, KH, KW), dtype=jnp.float32) * 0.1
    gamma = 1.0 + 0.1 * jax.random.normal(kg, (OC,), dtype=jnp.float32)
    beta = 0.1 * jax.random.normal(kb, (OC,), dtype=jnp.float32)

    ref = _reference_bn(x, weight, gamma, beta, STRIDE, PAD)
    out = conv2d_block(x, weight, stride=STRIDE, padding=PAD,
                       normalize=True, gamma=gamma, beta=beta)
    out = jax.block_until_ready(out)
    assert out.shape == (N, OC, H, W), out.shape
    assert jnp.allclose(out, ref, atol=5e-2, rtol=5e-2), \
        float(jnp.max(jnp.abs(out - ref)))

    # ---- Test 1b: BN path, exact f32 operands (tight tolerance) --------------
    out1b = conv2d_block(x, weight, stride=STRIDE, padding=PAD,
                         normalize=True, gamma=gamma, beta=beta,
                         use_bf16_matmul=False)
    out1b = jax.block_until_ready(out1b)
    assert jnp.allclose(out1b, ref, atol=1e-3, rtol=1e-3), \
        float(jnp.max(jnp.abs(out1b - ref)))

    # ---- Test 2: no-BN path (conv + bias + ReLU), exact f32 ------------------
    kb2 = jax.random.split(kb)[0]
    bias = 0.1 * jax.random.normal(kb2, (OC,), dtype=jnp.float32)
    ref2 = _reference_bias(x, weight, bias, STRIDE, PAD)
    out2 = conv2d_block(x, weight, stride=STRIDE, padding=PAD,
                        normalize=False, bias=bias, use_bf16_matmul=False)
    out2 = jax.block_until_ready(out2)
    assert jnp.allclose(out2, ref2, atol=5e-4, rtol=5e-4), \
        float(jnp.max(jnp.abs(out2 - ref2)))

    # ---- Test 2b: no-BN path with default bf16 operands ----------------------
    out2b = conv2d_block(x, weight, stride=STRIDE, padding=PAD,
                         normalize=False, bias=bias)
    out2b = jax.block_until_ready(out2b)
    assert jnp.allclose(out2b, ref2, atol=5e-2, rtol=5e-2), \
        float(jnp.max(jnp.abs(out2b - ref2)))

    # ---- Test 3: larger shape — multi-tile M with tight padding --------------
    # M = 800 -> 2 tiles of 400 (no padding), K = 576 -> padded to 640 only.
    N3, C3, H3, W3, OC3 = 2, 64, 20, 20, 8
    k1, k2, k3, k4 = jax.random.split(jax.random.PRNGKey(1), 4)
    x3 = jax.random.normal(k1, (N3, C3, H3, W3), dtype=jnp.float32)
    w3 = jax.random.normal(k2, (OC3, C3, 3, 3), dtype=jnp.float32) * 0.05
    g3 = 1.0 + 0.1 * jax.random.normal(k3, (OC3,), dtype=jnp.float32)
    b3 = 0.1 * jax.random.normal(k4, (OC3,), dtype=jnp.float32)
    out3 = conv2d_block(x3, w3, stride=1, padding=1,
                        normalize=True, gamma=g3, beta=b3)
    out3 = jax.block_until_ready(out3)
    ref3 = _reference_bn(x3, w3, g3, b3, 1, 1)
    assert out3.shape == (N3, OC3, H3, W3), out3.shape
    assert jnp.allclose(out3, ref3, atol=5e-2, rtol=5e-2), \
        float(jnp.max(jnp.abs(out3 - ref3)))

    print("KERNEL_OK")
</pallas_src>

<mosaic_0001>
module attributes {stable_mosaic.version = 11 : i64} {
  func.func @_conv_stats_kernel(%arg0: i32, %arg1: i32, %arg2: memref<256x128xbf16, #tpu.memory_space<vmem>>, %arg3: memref<128x128xbf16, #tpu.memory_space<vmem>>, %arg4: memref<256x128xbf16, #tpu.memory_space<vmem>>, %arg5: memref<8x128xf32, #tpu.memory_space<vmem>>) attributes {dimension_semantics = [#tpu.dimension_semantics<parallel>, #tpu.dimension_semantics<parallel>], iteration_bounds = array<i64: 2, 1>, scalar_prefetch = 0 : i64, scratch_operands = 0 : i64, tpu.core_type = #tpu.core_type<tc>, window_params = [{transform_indices = @transform_0, window_bounds = array<i64: 256, 128>}, {transform_indices = @transform_1, window_bounds = array<i64: 128, 128>}, {transform_indices = @transform_2, window_bounds = array<i64: 256, 128>}, {transform_indices = @transform_3, window_bounds = array<i64: 8, 128>}]} {
    %c0 = arith.constant 0 : index
    %c0_0 = arith.constant 0 : index
    %0 = vector.load %arg2[%c0, %c0_0] : memref<256x128xbf16, #tpu.memory_space<vmem>>, vector<256x128xbf16>
    %c0_1 = arith.constant 0 : index
    %c0_2 = arith.constant 0 : index
    %1 = vector.load %arg3[%c0_1, %c0_2] : memref<128x128xbf16, #tpu.memory_space<vmem>>, vector<128x128xbf16>
    %cst = arith.constant dense<0.000000e+00> : vector<256x128xf32>
    %2 = tpu.matmul %0, %1, %cst {dimension_numbers = #tpu.dot_dimension_numbers<[1], [0], [0], [1], [0, 0, 1, 1], [], []>} : vector<256x128xbf16>, vector<128x128xbf16>, vector<256x128xf32> -> vector<256x128xf32>
    %cst_3 = arith.constant dense<0.000000e+00> : vector<128xf32>
    %3 = vector.multi_reduction <add>, %2, %cst_3 [0] : vector<256x128xf32> to vector<128xf32>
    %4 = vector.shape_cast %3 : vector<128xf32> to vector<1x128xf32>
    %c0_4 = arith.constant 0 : index
    %c0_5 = arith.constant 0 : index
    %5 = vector.load %arg5[%c0_4, %c0_5] : memref<8x128xf32, #tpu.memory_space<vmem>>, vector<1x128xf32>
    tpu.vector_store %arg5[%c0_4, %c0_5], %4 {strides = array<i32>} : memref<8x128xf32, #tpu.memory_space<vmem>>, vector<1x128xf32>,
    %6 = arith.mulf %2, %2 : vector<256x128xf32>
    %cst_6 = arith.constant dense<0.000000e+00> : vector<128xf32>
    %7 = vector.multi_reduction <add>, %6, %cst_6 [0] : vector<256x128xf32> to vector<128xf32>
    %8 = vector.shape_cast %7 : vector<128xf32> to vector<1x128xf32>
    %c1 = arith.constant 1 : index
    %c0_7 = arith.constant 0 : index
    %9 = vector.load %arg5[%c1, %c0_7] : memref<8x128xf32, #tpu.memory_space<vmem>>, vector<1x128xf32>
    tpu.vector_store %arg5[%c1, %c0_7], %8 {strides = array<i32>} : memref<8x128xf32, #tpu.memory_space<vmem>>, vector<1x128xf32>,
    %cst_8 = arith.constant 0.000000e+00 : f32
    %10 = vector.broadcast %cst_8 : f32 to vector<6x128xf32>
    %c2 = arith.constant 2 : index
    %c0_9 = arith.constant 0 : index
    %11 = vector.load %arg5[%c2, %c0_9] : memref<8x128xf32, #tpu.memory_space<vmem>>, vector<6x128xf32>
    tpu.vector_store %arg5[%c2, %c0_9], %10 {strides = array<i32>} : memref<8x128xf32, #tpu.memory_space<vmem>>, vector<6x128xf32>,
    %12 = arith.truncf %2 : vector<256x128xf32> to vector<256x128xbf16>
    %c0_10 = arith.constant 0 : index
    %c0_11 = arith.constant 0 : index
    %13 = vector.load %arg4[%c0_10, %c0_11] : memref<256x128xbf16, #tpu.memory_space<vmem>>, vector<256x128xbf16>
    tpu.vector_store %arg4[%c0_10, %c0_11], %12 {strides = array<i32>} : memref<256x128xbf16, #tpu.memory_space<vmem>>, vector<256x128xbf16>,
    return
  }
  func.func @transform_0(%arg0: i32, %arg1: i32) -> (i32, i32) {
    %c0_i32 = arith.constant 0 : i32
    %c0_i32_0 = arith.constant 0 : i32
    return %arg0, %c0_i32 : i32, i32
  }
  func.func @transform_1(%arg0: i32, %arg1: i32) -> (i32, i32) {
    %c0_i32 = arith.constant 0 : i32
    %c0_i32_0 = arith.constant 0 : i32
    return %c0_i32, %arg1 : i32, i32
  }
  func.func @transform_2(%arg0: i32, %arg1: i32) -> (i32, i32) {
    %c0_i32 = arith.constant 0 : i32
    return %arg0, %arg1 : i32, i32
  }
  func.func @transform_3(%arg0: i32, %arg1: i32) -> (i32, i32) {
    %c0_i32 = arith.constant 0 : i32
    return %arg0, %arg1 : i32, i32
  }
}

</mosaic_0001>

<llo_original>
// kernel: tpu_custom_call.1
$region0: #{tpu_custom_call.1}
  #allocation0 [shape = 'u32[]', space=smem, size = 0x4, offset = 0x4, fixed_abs, tag = 'smem constant byte address 0x4 - core index']
  #allocation1 [shape = 'u32[144,128]{1,0:T(1,128)}', space=vmem, size = 0x12000, scoped, tag = 'internal scratch']
  %s0 = inlined_call_operand.hbm [shape: bf16[512,128], index: 0, kind: input, shape index: {}]
  %s1 = inlined_call_operand.hbm [shape: bf16[128,128], index: 1, kind: input, shape index: {}]
  %s2 = inlined_call_operand.hbm [shape: bf16[512,128], index: 2, kind: output, shape index: {0}]
  %s3 = inlined_call_operand.hbm [shape: f32[16,128], index: 3, kind: output, shape index: {1}]
  %4 = xla_tuple %s2, %s3
  %s5 = sld [smem:[#allocation0]]
  $region57: #{tpu_custom_call.1} parent=0
    _
  %s7 = ssub.s32 1, %s5
  %s8 = scalar_select 0, %s7, %s5
  $region1: #{tpu_custom_call.1} parent=0
    #allocation2 [shape = 'u8[131072]{0}', space=vmem, size = 0x20000, scoped, tag = 'input window, operand 0']
    #allocation3 [shape = 's32[2]{0}', space=sflag, size = 0x8, scoped, tag = 'scoped memory for tpu_custom_call.1']
    #allocation4 [shape = 's32[2]{0}', space=sflag, size = 0x8, scoped, tag = 'scoped memory for tpu_custom_call.1']
    #allocation5 [shape = 'u8[32768]{0}', space=vmem, size = 0x8000, scoped, tag = 'input window, operand 1, single buffered']
    #allocation6 [shape = 's32[1]{0}', space=sflag, size = 0x4, scoped, tag = 'scoped memory for tpu_custom_call.1']
    #allocation7 [shape = 'u8[131072]{0}', space=vmem, size = 0x20000, scoped, tag = 'output window, operand 0']
    #allocation8 [shape = 'u8[8192]{0}', space=vmem, size = 0x2000, scoped, tag = 'output window, operand 1']
    #allocation9 [shape = 's32[2]{0}', space=sflag, size = 0x8, scoped, tag = 'scoped memory for tpu_custom_call.1']
    %9 = vsyncpa [#allocation3], 0
    %s10 = scalar_lea.sflag [#allocation3], 1
    %11 = vsyncpa %s10, 0
    %12 = vsyncpa [#allocation6], 0
    %13 = vsyncpa [#allocation4], 0
    %s14 = scalar_lea.sflag [#allocation4], 1
    %15 = vsyncpa %s14, 0
    %16 = vsyncpa [#allocation9], 0
    %s17 = scalar_lea.sflag [#allocation9], 1
    %18 = vsyncpa %s17, 0
    loop: start=0, step=1, limit=4
    $region2: #{tpu_custom_call.1} parent=1 // loop_pre_header
      _
    $region3: #{tpu_custom_call.1} parent=1 // loop_header
      %s20 = sphi 0, %s24
      %p21 = scmp.ge.s32.totalorder %s20, 4
      %s27 = sphi 0, %s39
      %s28 = sphi 0, %s35
      %s29 = sphi 0, %s27
      %s30 = sphi 0, %s28
      %s31 = sphi 0, %s29
      %s32 = sphi 0, %s30
      %s42 = sphi 0, %s44
      %s45 = sphi 0, %s42
      %s46 = sphi 0, %s45
      %s62 = sphi 0, %s46
      %s68 = sphi 0, %s70
      %s71 = sphi 0, %s68
      %s72 = sphi 0, %s71
      %s88 = sphi 0, %s72
      %s96 = sphi 0, %s98
      %s99 = sphi 0, %s96
      %s100 = sphi 0, %s99
      %s116 = sphi 0, %s100
      %s124 = sphi 0, %s126
      %s127 = sphi 0, %s124
      %s128 = sphi 0, %s127
      %s144 = sphi 0, %s128
    $region4: #{tpu_custom_call.1} parent=1 // loop_header_branch
      %23 = sbr.rel (%p21) target = $region8
    $region5: #{tpu_custom_call.1} parent=1 // loop_body
      %s25 = ssub.s32 %s20, 1
      %s26 = ssub.s32 %s20, 2
      %s33 = sadd.s32 1, %s28
      %p34 = scmp.ge.s32.totalorder %s33, 1
      %s35 = scalar_select %p34, 0, %s33
      %s36 = sadd.s32 1, %s27
      %s37 = scalar_select %p34, %s36, %s27
      %p38 = scmp.ge.s32.totalorder %s37, 2
      %s39 = scalar_select %p38, 0, %s37
      %s40 = ssub.s32 %s27, %s39
      %p41 = scmp.eq.s32.totalorder %s40, 0
      %s43 = sadd.s32 %s42, 1
      %s44 = scalar_select %p41, %s42, %s43
      %p47 = pneg %p41
      %p48 = scmp.eq.s32.totalorder %s20, 1
      %p49 = por %p47, %p48
      %p50 = scmp.ne.s32.totalorder %s42, %s45
      %p51 = scmp.eq.s32.totalorder %s20, 0
      %p52 = por %p50, %p51
      %p53 = scmp.ne.s32.totalorder %s42, %s45
      %p54 = scmp.eq.s32.totalorder %s25, 1
      %p55 = por %p53, %p54
      %p56 = scmp.ne.s32.totalorder %s45, %s46
      %p57 = scmp.eq.s32.totalorder %s25, 0
      %p58 = por %p56, %p57
      %p59 = scmp.ne.s32.totalorder %s45, %s46
      %p60 = scmp.eq.s32.totalorder %s26, 1
      %p61 = por %p59, %p60
      %p63 = scmp.ne.s32.totalorder %s46, %s62
      %p64 = scmp.eq.s32.totalorder %s26, 0
      %p65 = por %p63, %p64
      %s66 = ssub.s32 %s28, %s35
      %p67 = scmp.eq.s32.totalorder %s66, 0
      %s69 = sadd.s32 %s68, 1
      %s70 = scalar_select %p67, %s68, %s69
      %p73 = pneg %p67
      %p74 = scmp.eq.s32.totalorder %s20, 1
      %p75 = por %p73, %p74
      %p76 = scmp.ne.s32.totalorder %s68, %s71
      %p77 = scmp.eq.s32.totalorder %s20, 0
      %p78 = por %p76, %p77
      %p79 = scmp.ne.s32.totalorder %s68, %s71
      %p80 = scmp.eq.s32.totalorder %s25, 1
      %p81 = por %p79, %p80
      %p82 = scmp.ne.s32.totalorder %s71, %s72
      %p83 = scmp.eq.s32.totalorder %s25, 0
      %p84 = por %p82, %p83
      %p85 = scmp.ne.s32.totalorder %s71, %s72
      %p86 = scmp.eq.s32.totalorder %s26, 1
      %p87 = por %p85, %p86
      %p89 = scmp.ne.s32.totalorder %s72, %s88
      %p90 = scmp.eq.s32.totalorder %s26, 0
      %p91 = por %p89, %p90
      %s92 = ssub.s32 %s27, %s39
      %s93 = ssub.s32 %s28, %s35
      %s94 = sor.u32 %s92, %s93
      %p95 = scmp.eq.s32.totalorder %s94, 0
      %s97 = sadd.s32 %s96, 1
      %s98 = scalar_select %p95, %s96, %s97
      %p101 = pneg %p95
      %p102 = scmp.eq.s32.totalorder %s20, 1
      %p103 = por %p101, %p102
      %p104 = scmp.ne.s32.totalorder %s96, %s99
      %p105 = scmp.eq.s32.totalorder %s20, 0
      %p106 = por %p104, %p105
      %p107 = scmp.ne.s32.totalorder %s96, %s99
      %p108 = scmp.eq.s32.totalorder %s25, 1
      %p109 = por %p107, %p108
      %p110 = scmp.ne.s32.totalorder %s99, %s100
      %p111 = scmp.eq.s32.totalorder %s25, 0
      %p112 = por %p110, %p111
      %p113 = scmp.ne.s32.totalorder %s99, %s100
      %p114 = scmp.eq.s32.totalorder %s26, 1
      %p115 = por %p113, %p114
      %p117 = scmp.ne.s32.totalorder %s100, %s116
      %p118 = scmp.eq.s32.totalorder %s26, 0
      %p119 = por %p117, %p118
      %s120 = ssub.s32 %s27, %s39
      %s121 = ssub.s32 %s28, %s35
      %s122 = sor.u32 %s120, %s121
      %p123 = scmp.eq.s32.totalorder %s122, 0
      %s125 = sadd.s32 %s124, 1
      %s126 = scalar_select %p123, %s124, %s125
      %p129 = pneg %p123
      %p130 = scmp.eq.s32.totalorder %s20, 1
      %p131 = por %p129, %p130
      %p132 = scmp.ne.s32.totalorder %s124, %s127
      %p133 = scmp.eq.s32.totalorder %s20, 0
      %p134 = por %p132, %p133
      %p135 = scmp.ne.s32.totalorder %s124, %s127
      %p136 = scmp.eq.s32.totalorder %s25, 1
      %p137 = por %p135, %p136
      %p138 = scmp.ne.s32.totalorder %s127, %s128
      %p139 = scmp.eq.s32.totalorder %s25, 0
      %p140 = por %p138, %p139
      %p141 = scmp.ne.s32.totalorder %s127, %s128
      %p142 = scmp.eq.s32.totalorder %s26, 1
      %p143 = por %p141, %p142
      %p145 = scmp.ne.s32.totalorder %s128, %s144
      %p146 = scmp.eq.s32.totalorder %s26, 0
      %p147 = por %p145, %p146
      %p148 = scmp.le.s32.totalorder 1, %s20
      %p149 = scmp.lt.s32.totalorder %s20, 3
      %p150 = pnand %p148, %p149
      %p151 = pneg %p150
      // Predicated region
      $region9: #{tpu_custom_call.1} parent=5 // pred_check
        _
      $region10: #{tpu_custom_call.1} parent=5 // pred_check_branch
        %153 = sbr.rel (%p150) target = $region12
      $region11: #{tpu_custom_call.1} parent=5 // pred_region
        %s154 = ssub.s32 %s20, 1
        // Predicated region
        $region13: #{tpu_custom_call.1} parent=11 // pred_check
          %p155 = pneg %p84
        $region14: #{tpu_custom_call.1} parent=11 // pred_check_branch
          %157 = sbr.rel (%p155) target = $region16
        $region15: #{tpu_custom_call.1} parent=11 // pred_region
          %s159 = ssub.s32 1024, 1024
          %160 = vsyncadd [#allocation6], %s159
          %s161 = smul.addr %s30, 64
          %s162 = scalar_lea.hbm %s1, %s161
          %s163 = sshll.u32 [#allocation5], 4
          %s164 = int_to_ptr.vmem [resolvable:$true] %s163
          %169 = dma.hbm_to_vmem [thread:$0]  %s162, 1024, %s164, [#allocation6], 64, 64, 4
        $region16: #{tpu_custom_call.1} parent=11 // pred_fallthru
          _
      $region12: #{tpu_custom_call.1} parent=5 // pred_fallthru
        _
      %p170 = scmp.lt.s32.totalorder %s20, 2
      // Predicated region
      $region17: #{tpu_custom_call.1} parent=5 // pred_check
        %p171 = pneg %p170
      $region18: #{tpu_custom_call.1} parent=5 // pred_check_branch
        %173 = sbr.rel (%p171) target = $region20
      $region19: #{tpu_custom_call.1} parent=5 // pred_region
        // Predicated region
        $region21: #{tpu_custom_call.1} parent=19 // pred_check
          %p174 = pneg %p52
        $region22: #{tpu_custom_call.1} parent=19 // pred_check_branch
          %176 = sbr.rel (%p174) target = $region24
        $region23: #{tpu_custom_call.1} parent=19 // pred_region
          %s177 = sand.u32 %s42, 1
          %s178 = scalar_lea.sflag [#allocation3], %s177
          %s179 = sand.u32 %s42, 1
          %s180 = smul.addr %s179, 128
          %s181 = scalar_lea.vmem [#allocation2], %s180
          %s182 = smul.u32 32, %s27
          %s184 = ssub.s32 2048, 2048
          %185 = vsyncadd %s178, %s184
          %s186 = smul.addr %s182, 64
          %s187 = scalar_lea.hbm %s0, %s186
          %s188 = sshll.u32 %s181, 4
          %s189 = int_to_ptr.vmem [resolvable:$true] %s188
          %194 = dma.hbm_to_vmem [thread:$0]  %s187, 2048, %s189, %s178, 64, 64, 4
        $region24: #{tpu_custom_call.1} parent=19 // pred_fallthru
          _
      $region20: #{tpu_custom_call.1} parent=5 // pred_fallthru
        _
      %p195 = scmp.le.s32.totalorder 1, %s20
      %p196 = scmp.lt.s32.totalorder %s20, 3
      %p197 = pnand %p195, %p196
      %p198 = pneg %p197
      // Predicated region
      $region25: #{tpu_custom_call.1} parent=5 // pred_check
        _
      $region26: #{tpu_custom_call.1} parent=5 // pred_check_branch
        %200 = sbr.rel (%p197) target = $region28
      $region27: #{tpu_custom_call.1} parent=5 // pred_region
        %s201 = ssub.s32 %s20, 1
        %s202 = sand.u32 %s45, 1
        %s203 = scalar_lea.sflag [#allocation3], %s202
        %s204 = sand.u32 %s45, 1
        %s205 = smul.addr %s204, 128
        %s206 = scalar_lea.vmem [#allocation2], %s205
        // Predicated region
        $region29: #{tpu_custom_call.1} parent=27 // pred_check
          %p207 = pneg %p58
        $region30: #{tpu_custom_call.1} parent=27 // pred_check_branch
          %209 = sbr.rel (%p207) target = $region32
        $region31: #{tpu_custom_call.1} parent=27 // pred_region
          %210 = dma.done %s203, 2048
        $region32: #{tpu_custom_call.1} parent=27 // pred_fallthru
          _
        // Predicated region
        $region33: #{tpu_custom_call.1} parent=27 // pred_check
          %p211 = pneg %p84
        $region34: #{tpu_custom_call.1} parent=27 // pred_check_branch
          %213 = sbr.rel (%p211) target = $region36
        $region35: #{tpu_custom_call.1} parent=27 // pred_region
          %214 = dma.done [#allocation6], 1024
        $region36: #{tpu_custom_call.1} parent=27 // pred_fallthru
          _
        %s215 = sand.u32 %s45, 1
        %s216 = scalar_lea.sflag [#allocation3], %s215
        %s217 = sand.u32 %s45, 1
        %s218 = smul.addr %s217, 128
        %s219 = scalar_lea.vmem [#allocation2], %s218
        %p220 = pneg %p58
        %p221 = pneg %p55
        %p222 = pneg %p84
        %p223 = pneg %p81
        %p224 = pneg %p112
        %p225 = pneg %p109
        %s226 = sand.u32 %s99, 1
        %s227 = scalar_lea.sflag [#allocation4], %s226
        %s228 = sand.u32 %s99, 1
        %s229 = smul.addr %s228, 128
        %s230 = scalar_lea.vmem [#allocation7], %s229
        %p231 = pneg %p140
        %p232 = pneg %p137
        %s233 = sand.u32 %s127, 1
        %s234 = scalar_lea.sflag [#allocation9], %s233
        %s235 = sand.u32 %s127, 1
        %s236 = smul.addr %s235, 8
        %s237 = scalar_lea.vmem [#allocation8], %s236
        %s238 = smul.u32 32, %s29
        %s239 = smul.u32 32, %s29
        %v241 = vld [vmem:[%s206] sm:$0xf]
        %v242 = vld [vmem:[%s206 + $0x4] sm:$0xf]
        %v243 = vld [vmem:[%s206 + $0x8] sm:$0xf]
        %v244 = vld [vmem:[%s206 + $0xc] sm:$0xf]
        %v245 = vld [vmem:[%s206 + $0x10] sm:$0xf]
        %v246 = vld [vmem:[%s206 + $0x14] sm:$0xf]
        %v247 = vld [vmem:[%s206 + $0x18] sm:$0xf]
        %v248 = vld [vmem:[%s206 + $0x1c] sm:$0xf]
        %v249 = vld [vmem:[%s206 + $0x20] sm:$0xf]
        %v250 = vld [vmem:[%s206 + $0x24] sm:$0xf]
        %v251 = vld [vmem:[%s206 + $0x28] sm:$0xf]
        %v252 = vld [vmem:[%s206 + $0x2c] sm:$0xf]
        %v253 = vld [vmem:[%s206 + $0x30] sm:$0xf]
        %v254 = vld [vmem:[%s206 + $0x34] sm:$0xf]
        %v255 = vld [vmem:[%s206 + $0x38] sm:$0xf]
        %v256 = vld [vmem:[%s206 + $0x3c] sm:$0xf]
        %v257 = vld [vmem:[%s206 + $0x40] sm:$0xf]
        %v258 = vld [vmem:[%s206 + $0x44] sm:$0xf]
        %v259 = vld [vmem:[%s206 + $0x48] sm:$0xf]
        %v260 = vld [vmem:[%s206 + $0x4c] sm:$0xf]
        %v261 = vld [vmem:[%s206 + $0x50] sm:$0xf]
        %v262 = vld [vmem:[%s206 + $0x54] sm:$0xf]
        %v263 = vld [vmem:[%s206 + $0x58] sm:$0xf]
        %v264 = vld [vmem:[%s206 + $0x5c] sm:$0xf]
        %v265 = vld [vmem:[%s206 + $0x60] sm:$0xf]
        %v266 = vld [vmem:[%s206 + $0x64] sm:$0xf]
        %v267 = vld [vmem:[%s206 + $0x68] sm:$0xf]
        %v268 = vld [vmem:[%s206 + $0x6c] sm:$0xf]
        %v269 = vld [vmem:[%s206 + $0x70] sm:$0xf]
        %v270 = vld [vmem:[%s206 + $0x74] sm:$0xf]
        %v271 = vld [vmem:[%s206 + $0x78] sm:$0xf]
        %v272 = vld [vmem:[%s206 + $0x7c] sm:$0xf]
        %v273 = vld [vmem:[#allocation5] sm:$0xf]
        %v274 = vld [vmem:[#allocation5 + $0x4] sm:$0xf]
        %v275 = vld [vmem:[#allocation5 + $0x8] sm:$0xf]
        %v276 = vld [vmem:[#allocation5 + $0xc] sm:$0xf]
        %v277 = vld [vmem:[#allocation5 + $0x10] sm:$0xf]
        %v278 = vld [vmem:[#allocation5 + $0x14] sm:$0xf]
        %v279 = vld [vmem:[#allocation5 + $0x18] sm:$0xf]
        %v280 = vld [vmem:[#allocation5 + $0x1c] sm:$0xf]
        %v281 = vld [vmem:[#allocation5 + $0x20] sm:$0xf]
        %v282 = vld [vmem:[#allocation5 + $0x24] sm:$0xf]
        %v283 = vld [vmem:[#allocation5 + $0x28] sm:$0xf]
        %v284 = vld [vmem:[#allocation5 + $0x2c] sm:$0xf]
        %v285 = vld [vmem:[#allocation5 + $0x30] sm:$0xf]
        %v286 = vld [vmem:[#allocation5 + $0x34] sm:$0xf]
        %v287 = vld [vmem:[#allocation5 + $0x38] sm:$0xf]
        %v288 = vld [vmem:[#allocation5 + $0x3c] sm:$0xf]
        %v321 = vunpack.c.l.b16 %v241
        %v322 = vunpack.c.l.b16 %v242
        %v323 = vunpack.c.l.b16 %v243
        %v324 = vunpack.c.l.b16 %v244
        %v325 = vunpack.c.l.b16 %v245
        %v326 = vunpack.c.l.b16 %v246
        %v327 = vunpack.c.l.b16 %v247
        %v328 = vunpack.c.l.b16 %v248
        %v329 = vunpack.c.l.b16 %v249
        %v330 = vunpack.c.l.b16 %v250
        %v331 = vunpack.c.l.b16 %v251
        %v332 = vunpack.c.l.b16 %v252
        %v333 = vunpack.c.l.b16 %v253
        %v334 = vunpack.c.l.b16 %v254
        %v335 = vunpack.c.l.b16 %v255
        %v336 = vunpack.c.l.b16 %v256
        %v337 = vunpack.c.l.b16 %v257
        %v338 = vunpack.c.l.b16 %v258
        %v339 = vunpack.c.l.b16 %v259
        %v340 = vunpack.c.l.b16 %v260
        %v341 = vunpack.c.l.b16 %v261
        %v342 = vunpack.c.l.b16 %v262
        %v343 = vunpack.c.l.b16 %v263
        %v344 = vunpack.c.l.b16 %v264
        %v345 = vunpack.c.l.b16 %v265
        %v346 = vunpack.c.l.b16 %v266
        %v347 = vunpack.c.l.b16 %v267
        %v348 = vunpack.c.l.b16 %v268
        %v349 = vunpack.c.l.b16 %v269
        %v350 = vunpack.c.l.b16 %v270
        %v351 = vunpack.c.l.b16 %v271
        %v352 = vunpack.c.l.b16 %v272
        %v353 = vpack.c.b16 %v322, %v321
        %v354 = vpack.c.b16 %v324, %v323
        %v355 = vpack.c.b16 %v326, %v325
        %v356 = vpack.c.b16 %v328, %v327
        %v357 = vpack.c.b16 %v330, %v329
        %v358 = vpack.c.b16 %v332, %v331
        %v359 = vpack.c.b16 %v334, %v333
        %v360 = vpack.c.b16 %v336, %v335
        %v361 = vpack.c.b16 %v338, %v337
        %v362 = vpack.c.b16 %v340, %v339
        %v363 = vpack.c.b16 %v342, %v341
        %v364 = vpack.c.b16 %v344, %v343
        %v365 = vpack.c.b16 %v346, %v345
        %v366 = vpack.c.b16 %v348, %v347
        %v367 = vpack.c.b16 %v350, %v349
        %v368 = vpack.c.b16 %v352, %v351
        %v401 = vunpack.c.l.b16 %v273
        %v402 = vunpack.c.l.b16 %v274
        %v403 = vunpack.c.l.b16 %v275
        %v404 = vunpack.c.l.b16 %v276
        %v405 = vunpack.c.l.b16 %v277
        %v406 = vunpack.c.l.b16 %v278
        %v407 = vunpack.c.l.b16 %v279
        %v408 = vunpack.c.l.b16 %v280
        %v409 = vunpack.c.l.b16 %v281
        %v410 = vunpack.c.l.b16 %v282
        %v411 = vunpack.c.l.b16 %v283
        %v412 = vunpack.c.l.b16 %v284
        %v413 = vunpack.c.l.b16 %v285
        %v414 = vunpack.c.l.b16 %v286
        %v415 = vunpack.c.l.b16 %v287
        %v416 = vunpack.c.l.b16 %v288
        %v417 = vpack.c.b16 %v402, %v401
        %v418 = vpack.c.b16 %v404, %v403
        %v419 = vpack.c.b16 %v406, %v405
        %v420 = vpack.c.b16 %v408, %v407
        %v421 = vpack.c.b16 %v410, %v409
        %v422 = vpack.c.b16 %v412, %v411
        %v423 = vpack.c.b16 %v414, %v413
        %v424 = vpack.c.b16 %v416, %v415
        %433 = vmatprep.subr.bf16.mxu0 0
        %434 = vmatpush1.bf16.msra.mxu0 %v417
        %435 = vmatprep.subr.bf16.mxu0 0
        %436 = vmatpush1.bf16.msra.mxu0 %v418
        %437 = vmatprep.subr.bf16.mxu0 0
        %438 = vmatpush1.bf16.msra.mxu0 %v419
        %439 = vmatprep.subr.bf16.mxu0 0
        %440 = vmatpush1.bf16.msra.mxu0 %v420
        %441 = vmatprep.subr.bf16.mxu0 0
        %442 = vmatpush1.bf16.msra.mxu0 %v421
        %443 = vmatprep.subr.bf16.mxu0 0
        %444 = vmatpush1.bf16.msra.mxu0 %v422
        %445 = vmatprep.subr.bf16.mxu0 0
        %446 = vmatpush1.bf16.msra.mxu0 %v423
        %447 = vmatprep.subr.bf16.mxu0 0
        %448 = vmatpush1.bf16.msra.mxu0 %v424
        %449 = vmatprep.subr.bf16.mxu0 0
        %450 = vmatpush1.bf16.msra.mxu0 0
        %451 = vmatprep.subr.bf16.mxu0 0
        %452 = vmatpush1.bf16.msra.mxu0 0
        %453 = vmatprep.subr.bf16.mxu0 0
        %454 = vmatpush1.bf16.msra.mxu0 0
        %455 = vmatprep.subr.bf16.mxu0 0
        %456 = vmatpush1.bf16.msra.mxu0 0
        %457 = vmatprep.subr.bf16.mxu0 0
        %458 = vmatpush1.bf16.msra.mxu0 0
        %459 = vmatprep.subr.bf16.mxu0 0
        %460 = vmatpush1.bf16.msra.mxu0 0
        %461 = vmatprep.subr.bf16.mxu0 0
        %462 = vmatpush1.bf16.msra.mxu0 0
        %463 = vmatprep.subr.bf16.mxu0 0
        %464 = vmatpush1.bf16.msra.mxu0 0
        %465 = vmatprep.mubr.bf16.mxu0 0
        %466 = vmatmul.mubr.bf16.gmra.mrb[0].mxu0 %v353
        %v467 = vpop.f32.mrb[0].mxu0
        %v468 = vadd.f32 0.0, %v467
        %v469 = vpop.f32.mrb[0].mxu0
        %v470 = vpop.f32.mrb[0].mxu0
        %v471 = vadd.f32 0.0, %v470
        %v472 = vpop.f32.mrb[0].mxu0
        %473 = vmatprep.mubr.bf16.mxu0 0
        %474 = vmatmul.mubr.bf16.gmra.mrb[0].mxu0 %v354
        %v475 = vpop.f32.mrb[0].mxu0
        %v476 = vadd.f32 0.0, %v475
        %v477 = vpop.f32.mrb[0].mxu0
        %v478 = vpop.f32.mrb[0].mxu0
        %v479 = vadd.f32 0.0, %v478
        %v480 = vpop.f32.mrb[0].mxu0
        %481 = vmatprep.mubr.bf16.mxu0 0
        %482 = vmatmul.mubr.bf16.gmra.mrb[0].mxu0 %v355
        %v483 = vpop.f32.mrb[0].mxu0
        %v484 = vadd.f32 0.0, %v483
        %v485 = vpop.f32.mrb[0].mxu0
        %v486 = vpop.f32.mrb[0].mxu0
        %v487 = vadd.f32 0.0, %v486
        %v488 = vpop.f32.mrb[0].mxu0
        %489 = vmatprep.mubr.bf16.mxu0 0
        %490 = vmatmul.mubr.bf16.gmra.mrb[0].mxu0 %v356
        %v491 = vpop.f32.mrb[0].mxu0
        %v492 = vadd.f32 0.0, %v491
        %v493 = vpop.f32.mrb[0].mxu0
        %v494 = vpop.f32.mrb[0].mxu0
        %v495 = vadd.f32 0.0, %v494
        %v496 = vpop.f32.mrb[0].mxu0
        %497 = vmatprep.mubr.bf16.mxu0 0
        %498 = vmatmul.mubr.bf16.gmra.mrb[0].mxu0 %v357
        %v499 = vpop.f32.mrb[0].mxu0
        %v500 = vadd.f32 0.0, %v499
        %v501 = vpop.f32.mrb[0].mxu0
        %v502 = vpop.f32.mrb[0].mxu0
        %v503 = vadd.f32 0.0, %v502
        %v504 = vpop.f32.mrb[0].mxu0
        %505 = vmatprep.mubr.bf16.mxu0 0
        %506 = vmatmul.mubr.bf16.gmra.mrb[0].mxu0 %v358
        %v507 = vpop.f32.mrb[0].mxu0
        %v508 = vadd.f32 0.0, %v507
        %v509 = vpop.f32.mrb[0].mxu0
        %v510 = vpop.f32.mrb[0].mxu0
        %v511 = vadd.f32 0.0, %v510
        %v512 = vpop.f32.mrb[0].mxu0
        %513 = vmatprep.mubr.bf16.mxu0 0
        %514 = vmatmul.mubr.bf16.gmra.mrb[0].mxu0 %v359
        %v515 = vpop.f32.mrb[0].mxu0
        %v516 = vadd.f32 0.0, %v515
        %v517 = vpop.f32.mrb[0].mxu0
        %v518 = vpop.f32.mrb[0].mxu0
        %v519 = vadd.f32 0.0, %v518
        %v520 = vpop.f32.mrb[0].mxu0
        %521 = vmatprep.mubr.bf16.mxu0 0
        %522 = vmatmul.mubr.bf16.gmra.mrb[0].mxu0 %v360
        %v523 = vpop.f32.mrb[0].mxu0
        %v524 = vadd.f32 0.0, %v523
        %v525 = vpop.f32.mrb[0].mxu0
        %v526 = vpop.f32.mrb[0].mxu0
        %v527 = vadd.f32 0.0, %v526
        %v528 = vpop.f32.mrb[0].mxu0
        %529 = vmatprep.mubr.bf16.mxu0 0
        %530 = vmatmul.mubr.bf16.gmra.mrb[0].mxu0 %v361
        %v531 = vpop.f32.mrb[0].mxu0
        %v532 = vadd.f32 0.0, %v531
        %v533 = vpop.f32.mrb[0].mxu0
        %v534 = vpop.f32.mrb[0].mxu0
        %v535 = vadd.f32 0.0, %v534
        %v536 = vpop.f32.mrb[0].mxu0
        %537 = vmatprep.mubr.bf16.mxu0 0
        %538 = vmatmul.mubr.bf16.gmra.mrb[0].mxu0 %v362
        %v539 = vpop.f32.mrb[0].mxu0
        %v540 = vadd.f32 0.0, %v539
        %v541 = vpop.f32.mrb[0].mxu0
        %v542 = vpop.f32.mrb[0].mxu0
        %v543 = vadd.f32 0.0, %v542
        %v544 = vpop.f32.mrb[0].mxu0
        %545 = vmatprep.mubr.bf16.mxu0 0
        %546 = vmatmul.mubr.bf16.gmra.mrb[0].mxu0 %v363
        %v547 = vpop.f32.mrb[0].mxu0
        %v548 = vadd.f32 0.0, %v547
        %v549 = vpop.f32.mrb[0].mxu0
        %v550 = vpop.f32.mrb[0].mxu0
        %v551 = vadd.f32 0.0, %v550
        %v552 = vpop.f32.mrb[0].mxu0
        %553 = vmatprep.mubr.bf16.mxu0 0
        %554 = vmatmul.mubr.bf16.gmra.mrb[0].mxu0 %v364
        %v555 = vpop.f32.mrb[0].mxu0
        %v556 = vadd.f32 0.0, %v555
        %v557 = vpop.f32.mrb[0].mxu0
        %v558 = vpop.f32.mrb[0].mxu0
        %v559 = vadd.f32 0.0, %v558
        %v560 = vpop.f32.mrb[0].mxu0
        %561 = vmatprep.mubr.bf16.mxu0 0
        %562 = vmatmul.mubr.bf16.gmra.mrb[0].mxu0 %v365
        %v563 = vpop.f32.mrb[0].mxu0
        %v564 = vadd.f32 0.0, %v563
        %v565 = vpop.f32.mrb[0].mxu0
        %v566 = vpop.f32.mrb[0].mxu0
        %v567 = vadd.f32 0.0, %v566
        %v568 = vpop.f32.mrb[0].mxu0
        %569 = vmatprep.mubr.bf16.mxu0 0
        %570 = vmatmul.mubr.bf16.gmra.mrb[0].mxu0 %v366
        %v571 = vpop.f32.mrb[0].mxu0
        %v572 = vadd.f32 0.0, %v571
        %v573 = vpop.f32.mrb[0].mxu0
        %v574 = vpop.f32.mrb[0].mxu0
        %v575 = vadd.f32 0.0, %v574
        %v576 = vpop.f32.mrb[0].mxu0
        %577 = vmatprep.mubr.bf16.mxu0 0
        %578 = vmatmul.mubr.bf16.gmra.mrb[0].mxu0 %v367
        %v579 = vpop.f32.mrb[0].mxu0
        %v580 = vadd.f32 0.0, %v579
        %v581 = vpop.f32.mrb[0].mxu0
        %v582 = vpop.f32.mrb[0].mxu0
        %v583 = vadd.f32 0.0, %v582
        %v584 = vpop.f32.mrb[0].mxu0
        %585 = vmatprep.mubr.bf16.mxu0 0
        %586 = vmatmul.mubr.bf16.gmra.mrb[0].mxu0 %v368
        %v587 = vpop.f32.mrb[0].mxu0
        %v588 = vadd.f32 0.0, %v587
        %v589 = vpop.f32.mrb[0].mxu0
        %v590 = vpop.f32.mrb[0].mxu0
        %v591 = vadd.f32 0.0, %v590
        %v592 = vpop.f32.mrb[0].mxu0
        %593 = vdwg.mxu0
        %v594 = vadd.f32 %v468, %v471
        %v595 = vadd.f32 %v594, %v476
        %v596 = vadd.f32 %v595, %v479
        %v597 = vadd.f32 %v596, %v484
        %v598 = vadd.f32 %v597, %v487
        %v599 = vadd.f32 %v598, %v492
        %v600 = vadd.f32 %v599, %v495
        %v601 = vadd.f32 %v600, %v500
        %v602 = vadd.f32 %v601, %v503
        %v603 = vadd.f32 %v602, %v508
        %v604 = vadd.f32 %v603, %v511
        %v605 = vadd.f32 %v604, %v516
        %v606 = vadd.f32 %v605, %v519
        %v607 = vadd.f32 %v606, %v524
        %v608 = vadd.f32 %v607, %v527
        %v609 = vadd.f32 %v608, %v532
        %v610 = vadd.f32 %v609, %v535
        %v611 = vadd.f32 %v610, %v540
        %v612 = vadd.f32 %v611, %v543
        %v613 = vadd.f32 %v612, %v548
        %v614 = vadd.f32 %v613, %v551
        %v615 = vadd.f32 %v614, %v556
        %v616 = vadd.f32 %v615, %v559
        %v617 = vadd.f32 %v616, %v564
        %v618 = vadd.f32 %v617, %v567
        %v619 = vadd.f32 %v618, %v572
        %v620 = vadd.f32 %v619, %v575
        %v621 = vadd.f32 %v620, %v580
        %v622 = vadd.f32 %v621, %v583
        %v623 = vadd.f32 %v622, %v588
        %v624 = vadd.f32 %v623, %v591
        %v625 = vrot.slane %v624, 4
        %v626 = vadd.f32 %v624, %v625
        %v627 = vrot.slane %v626, 2
        %v628 = vadd.f32 %v626, %v627
        %v629 = vrot.slane %v628, 1
        %v630 = vadd.f32 %v628, %v629
        %631 = vst [vmem:[%s237] sm:$0x1] %v630
        %v632 = vmul.f32 %v468, %v468
        %v633 = vmul.f32 %v471, %v471
        %v634 = vmul.f32 %v476, %v476
        %v635 = vmul.f32 %v479, %v479
        %v636 = vmul.f32 %v484, %v484
        %v637 = vmul.f32 %v487, %v487
        %v638 = vmul.f32 %v492, %v492
        %v639 = vmul.f32 %v495, %v495
        %v640 = vmul.f32 %v500, %v500
        %v641 = vmul.f32 %v503, %v503
        %v642 = vmul.f32 %v508, %v508
        %v643 = vmul.f32 %v511, %v511
        %v644 = vmul.f32 %v516, %v516
        %v645 = vmul.f32 %v519, %v519
        %v646 = vmul.f32 %v524, %v524
        %v647 = vmul.f32 %v527, %v527
        %v648 = vmul.f32 %v532, %v532
        %v649 = vmul.f32 %v535, %v535
        %v650 = vmul.f32 %v540, %v540
        %v651 = vmul.f32 %v543, %v543
        %v652 = vmul.f32 %v548, %v548
        %v653 = vmul.f32 %v551, %v551
        %v654 = vmul.f32 %v556, %v556
        %v655 = vmul.f32 %v559, %v559
        %v656 = vmul.f32 %v564, %v564
        %v657 = vmul.f32 %v567, %v567
        %v658 = vmul.f32 %v572, %v572
        %v659 = vmul.f32 %v575, %v575
        %v660 = vmul.f32 %v580, %v580
        %v661 = vmul.f32 %v583, %v583
        %v662 = vmul.f32 %v588, %v588
        %v663 = vmul.f32 %v591, %v591
        %v664 = vadd.f32 %v632, %v633
        %v665 = vadd.f32 %v664, %v634
        %v666 = vadd.f32 %v665, %v635
        %v667 = vadd.f32 %v666, %v636
        %v668 = vadd.f32 %v667, %v637
        %v669 = vadd.f32 %v668, %v638
        %v670 = vadd.f32 %v669, %v639
        %v671 = vadd.f32 %v670, %v640
        %v672 = vadd.f32 %v671, %v641
        %v673 = vadd.f32 %v672, %v642
        %v674 = vadd.f32 %v673, %v643
        %v675 = vadd.f32 %v674, %v644
        %v676 = vadd.f32 %v675, %v645
        %v677 = vadd.f32 %v676, %v646
        %v678 = vadd.f32 %v677, %v647
        %v679 = vadd.f32 %v678, %v648
        %v680 = vadd.f32 %v679, %v649
        %v681 = vadd.f32 %v680, %v650
        %v682 = vadd.f32 %v681, %v651
        %v683 = vadd.f32 %v682, %v652
        %v684 = vadd.f32 %v683, %v653
        %v685 = vadd.f32 %v684, %v654
        %v686 = vadd.f32 %v685, %v655
        %v687 = vadd.f32 %v686, %v656
        %v688 = vadd.f32 %v687, %v657
        %v689 = vadd.f32 %v688, %v658
        %v690 = vadd.f32 %v689, %v659
        %v691 = vadd.f32 %v690, %v660
        %v692 = vadd.f32 %v691, %v661
        %v693 = vadd.f32 %v692, %v662
        %v694 = vadd.f32 %v693, %v663
        %v695 = vrot.slane %v694, 4
        %v696 = vadd.f32 %v694, %v695
        %v697 = vrot.slane %v696, 2
        %v698 = vadd.f32 %v696, %v697
        %v699 = vrot.slane %v698, 1
        %v700 = vadd.f32 %v698, %v699
        %701 = vst [vmem:[%s237 + $0x1] sm:$0x1] %v700
        %702 = vst [vmem:[%s237 + $0x2] sm:$0x3f] 0.0
        %v703 = vpack.c.bf16 %v471, %v468
        %v704 = vpack.c.bf16 %v479, %v476
        %v705 = vpack.c.bf16 %v487, %v484
        %v706 = vpack.c.bf16 %v495, %v492
        %v707 = vpack.c.bf16 %v503, %v500
        %v708 = vpack.c.bf16 %v511, %v508
        %v709 = vpack.c.bf16 %v519, %v516
        %v710 = vpack.c.bf16 %v527, %v524
        %v711 = vpack.c.bf16 %v535, %v532
        %v712 = vpack.c.bf16 %v543, %v540
        %v713 = vpack.c.bf16 %v551, %v548
        %v714 = vpack.c.bf16 %v559, %v556
        %v715 = vpack.c.bf16 %v567, %v564
        %v716 = vpack.c.bf16 %v575, %v572
        %v717 = vpack.c.bf16 %v583, %v580
        %v718 = vpack.c.bf16 %v591, %v588
        %v735 = vunpack.c.l.b16 %v703
        %v736 = vunpack.c.h.b16 %v703
        %v737 = vunpack.c.l.b16 %v704
        %v738 = vunpack.c.h.b16 %v704
        %v739 = vunpack.c.l.b16 %v705
        %v740 = vunpack.c.h.b16 %v705
        %v741 = vunpack.c.l.b16 %v706
        %v742 = vunpack.c.h.b16 %v706
        %v743 = vunpack.c.l.b16 %v707
        %v744 = vunpack.c.h.b16 %v707
        %v745 = vunpack.c.l.b16 %v708
        %v746 = vunpack.c.h.b16 %v708
        %v747 = vunpack.c.l.b16 %v709
        %v748 = vunpack.c.h.b16 %v709
        %v749 = vunpack.c.l.b16 %v710
        %v750 = vunpack.c.h.b16 %v710
        %v751 = vunpack.c.l.b16 %v711
        %v752 = vunpack.c.h.b16 %v711
        %v753 = vunpack.c.l.b16 %v712
        %v754 = vunpack.c.h.b16 %v712
        %v755 = vunpack.c.l.b16 %v713
        %v756 = vunpack.c.h.b16 %v713
        %v757 = vunpack.c.l.b16 %v714
        %v758 = vunpack.c.h.b16 %v714
        %v759 = vunpack.c.l.b16 %v715
        %v760 = vunpack.c.h.b16 %v715
        %v761 = vunpack.c.l.b16 %v716
        %v762 = vunpack.c.h.b16 %v716
        %v763 = vunpack.c.l.b16 %v717
        %v764 = vunpack.c.h.b16 %v717
        %v765 = vunpack.c.l.b16 %v718
        %v766 = vunpack.c.h.b16 %v718
        %v767 = vpack.c.b16 %v735, %v735
        %v768 = vpack.c.b16 %v736, %v736
        %v769 = vpack.c.b16 %v737, %v737
        %v770 = vpack.c.b16 %v738, %v738
        %v771 = vpack.c.b16 %v739, %v739
        %v772 = vpack.c.b16 %v740, %v740
        %v773 = vpack.c.b16 %v741, %v741
        %v774 = vpack.c.b16 %v742, %v742
        %v775 = vpack.c.b16 %v743, %v743
        %v776 = vpack.c.b16 %v744, %v744
        %v777 = vpack.c.b16 %v745, %v745
        %v778 = vpack.c.b16 %v746, %v746
        %v779 = vpack.c.b16 %v747, %v747
        %v780 = vpack.c.b16 %v748, %v748
        %v781 = vpack.c.b16 %v749, %v749
        %v782 = vpack.c.b16 %v750, %v750
        %v783 = vpack.c.b16 %v751, %v751
        %v784 = vpack.c.b16 %v752, %v752
        %v785 = vpack.c.b16 %v753, %v753
        %v786 = vpack.c.b16 %v754, %v754
        %v787 = vpack.c.b16 %v755, %v755
        %v788 = vpack.c.b16 %v756, %v756
        %v789 = vpack.c.b16 %v757, %v757
        %v790 = vpack.c.b16 %v758, %v758
        %v791 = vpack.c.b16 %v759, %v759
        %v792 = vpack.c.b16 %v760, %v760
        %v793 = vpack.c.b16 %v761, %v761
        %v794 = vpack.c.b16 %v762, %v762
        %v795 = vpack.c.b16 %v763, %v763
        %v796 = vpack.c.b16 %v764, %v764
        %v797 = vpack.c.b16 %v765, %v765
        %v798 = vpack.c.b16 %v766, %v766
        %831 = vst [vmem:[%s230] sm:$0xf] %v767
        %832 = vst [vmem:[%s230 + $0x4] sm:$0xf] %v768
        %833 = vst [vmem:[%s230 + $0x8] sm:$0xf] %v769
        %834 = vst [vmem:[%s230 + $0xc] sm:$0xf] %v770
        %835 = vst [vmem:[%s230 + $0x10] sm:$0xf] %v771
        %836 = vst [vmem:[%s230 + $0x14] sm:$0xf] %v772
        %837 = vst [vmem:[%s230 + $0x18] sm:$0xf] %v773
        %838 = vst [vmem:[%s230 + $0x1c] sm:$0xf] %v774
        %839 = vst [vmem:[%s230 + $0x20] sm:$0xf] %v775
        %840 = vst [vmem:[%s230 + $0x24] sm:$0xf] %v776
        %841 = vst [vmem:[%s230 + $0x28] sm:$0xf] %v777
        %842 = vst [vmem:[%s230 + $0x2c] sm:$0xf] %v778
        %843 = vst [vmem:[%s230 + $0x30] sm:$0xf] %v779
        %844 = vst [vmem:[%s230 + $0x34] sm:$0xf] %v780
        %845 = vst [vmem:[%s230 + $0x38] sm:$0xf] %v781
        %846 = vst [vmem:[%s230 + $0x3c] sm:$0xf] %v782
        %847 = vst [vmem:[%s230 + $0x40] sm:$0xf] %v783
        %848 = vst [vmem:[%s230 + $0x44] sm:$0xf] %v784
        %849 = vst [vmem:[%s230 + $0x48] sm:$0xf] %v785
        %850 = vst [vmem:[%s230 + $0x4c] sm:$0xf] %v786
        %851 = vst [vmem:[%s230 + $0x50] sm:$0xf] %v787
        %852 = vst [vmem:[%s230 + $0x54] sm:$0xf] %v788
        %853 = vst [vmem:[%s230 + $0x58] sm:$0xf] %v789
        %854 = vst [vmem:[%s230 + $0x5c] sm:$0xf] %v790
        %855 = vst [vmem:[%s230 + $0x60] sm:$0xf] %v791
        %856 = vst [vmem:[%s230 + $0x64] sm:$0xf] %v792
        %857 = vst [vmem:[%s230 + $0x68] sm:$0xf] %v793
        %858 = vst [vmem:[%s230 + $0x6c] sm:$0xf] %v794
        %859 = vst [vmem:[%s230 + $0x70] sm:$0xf] %v795
        %860 = vst [vmem:[%s230 + $0x74] sm:$0xf] %v796
        %861 = vst [vmem:[%s230 + $0x78] sm:$0xf] %v797
        %862 = vst [vmem:[%s230 + $0x7c] sm:$0xf] %v798
        %s863 = sand.u32 %s99, 1
        %s864 = scalar_lea.sflag [#allocation4], %s863
        %s865 = sand.u32 %s99, 1
        %s866 = smul.addr %s865, 128
        %s867 = scalar_lea.vmem [#allocation7], %s866
        %s868 = sand.u32 %s127, 1
        %s869 = scalar_lea.sflag [#allocation9], %s868
        %s870 = sand.u32 %s127, 1
        %s871 = smul.addr %s870, 8
        %s872 = scalar_lea.vmem [#allocation8], %s871
        // Predicated region
        $region37: #{tpu_custom_call.1} parent=27 // pred_check
          %p873 = pneg %p109
        $region38: #{tpu_custom_call.1} parent=27 // pred_check_branch
          %875 = sbr.rel (%p873) target = $region40
        $region39: #{tpu_custom_call.1} parent=27 // pred_region
          %s876 = smul.u32 32, %s29
          %s878 = ssub.s32 2048, 2048
          %879 = vsyncadd %s864, %s878
          %s880 = sadd.s32 %s30, %s876
          %s881 = smul.addr %s880, 64
          %s882 = scalar_lea.hbm %s2, %s881
          %s883 = sshll.u32 %s867, 4
          %s884 = int_to_ptr.vmem [resolvable:$true] %s883
          %889 = dma.vmem_to_hbm [thread:$0]  %s884, 2048, %s882, %s864, 64, 64, 4
        $region40: #{tpu_custom_call.1} parent=27 // pred_fallthru
          _
        // Predicated region
        $region41: #{tpu_custom_call.1} parent=27 // pred_check
          %p890 = pneg %p137
        $region42: #{tpu_custom_call.1} parent=27 // pred_check_branch
          %892 = sbr.rel (%p890) target = $region44
        $region43: #{tpu_custom_call.1} parent=27 // pred_region
          %s894 = ssub.s32 128, 128
          %895 = vsyncadd %s869, %s894
          %s896 = sadd.s32 %s30, %s29
          %s897 = smul.addr %s896, 128
          %s898 = scalar_lea.hbm %s3, %s897
          %s900 = sshll.u32 %s872, 4
          %s901 = int_to_ptr.vmem [resolvable:$true] %s900
          %903 = dma.vmem_to_hbm [thread:$0]  %s901, 128, %s898, %s869
        $region44: #{tpu_custom_call.1} parent=27 // pred_fallthru
          _
      $region28: #{tpu_custom_call.1} parent=5 // pred_fallthru
        _
      %p904 = scmp.le.s32.totalorder 2, %s20
      // Predicated region
      $region45: #{tpu_custom_call.1} parent=5 // pred_check
        %p905 = pneg %p904
      $region46: #{tpu_custom_call.1} parent=5 // pred_check_branch
        %907 = sbr.rel (%p905) target = $region48
      $region47: #{tpu_custom_call.1} parent=5 // pred_region
        %s908 = ssub.s32 %s20, 2
        // Predicated region
        $region49: #{tpu_custom_call.1} parent=47 // pred_check
          %p909 = pneg %p115
        $region50: #{tpu_custom_call.1} parent=47 // pred_check_branch
          %911 = sbr.rel (%p909) target = $region52
        $region51: #{tpu_custom_call.1} parent=47 // pred_region
          %s912 = sand.u32 %s100, 1
          %s913 = scalar_lea.sflag [#allocation4], %s912
          %s914 = sand.u32 %s100, 1
          %s915 = smul.addr %s914, 128
          %s916 = scalar_lea.vmem [#allocation7], %s915
          %917 = dma.done %s913, 2048
        $region52: #{tpu_custom_call.1} parent=47 // pred_fallthru
          _
        // Predicated region
        $region53: #{tpu_custom_call.1} parent=47 // pred_check
          %p918 = pneg %p143
        $region54: #{tpu_custom_call.1} parent=47 // pred_check_branch
          %920 = sbr.rel (%p918) target = $region56
        $region55: #{tpu_custom_call.1} parent=47 // pred_region
          %s921 = sand.u32 %s128, 1
          %s922 = scalar_lea.sflag [#allocation9], %s921
          %s923 = sand.u32 %s128, 1
          %s924 = smul.addr %s923, 8
          %s925 = scalar_lea.vmem [#allocation8], %s924
          %926 = dma.done %s922, 128
        $region56: #{tpu_custom_call.1} parent=47 // pred_fallthru
          _
      $region48: #{tpu_custom_call.1} parent=5 // pred_fallthru
        _
    $region6: #{tpu_custom_call.1} parent=1 // loop_footer
      %s24 = sadd.s32 1, %s20
    $region7: #{tpu_custom_call.1} parent=1 // loop_footer_branch
      %19 = sbr.rel target = $region3
    $region8: #{tpu_custom_call.1} parent=1 // loop_exit
      _
    %927 = vsyncpa [#allocation3], 1
    %s928 = scalar_lea.sflag [#allocation3], 1
    %929 = vsyncpa %s928, 1
    %930 = vsyncpa [#allocation6], 1
    %931 = vsyncpa [#allocation4], 1
    %s932 = scalar_lea.sflag [#allocation4], 1
    %933 = vsyncpa %s932, 1
    %934 = vsyncpa [#allocation9], 1
    %s935 = scalar_lea.sflag [#allocation9], 1
    %936 = vsyncpa %s935, 1

</llo_original>
